<compile_context>
chip_gen: v5e
topology: v5e:2x2
jax: 0.10.0
libtpu: 0.0.40
codegen_flags: <defaults>
</compile_context>

<pallas_src>
import jax
import jax.numpy as jnp
from jax.experimental import pallas as pl
from jax.experimental.pallas import tpu as pltpu


def _round_up(x, m):
    return ((x + m - 1) // m) * m


def _two_layer_fc_kernel(x_ref, w1_ref, b1_ref, w2_ref, b2_ref, out_ref, acc_ref):
    # x_ref:   (tm, tk)   input row/reduction tile
    # w1_ref:  (tk, Hp)   fc1 weight tile, pre-transposed to (in, out)
    # b1_ref:  (1,  Hp)   fc1 bias (resident)
    # w2_ref:  (Hp, Cp)   fc2 weight, pre-transposed to (in, out) (resident)
    # b2_ref:  (1,  Cp)   fc2 bias (resident)
    # out_ref: (tm, Cp)   padded scores tile
    # acc_ref: (tm, Hp)   f32 accumulator scratch, persists across k steps
    k = pl.program_id(1)

    @pl.when(k == 0)
    def _():
        acc_ref[...] = jnp.zeros_like(acc_ref)

    # Pure MXU accumulate over the D reduction — no transposes, no VPU work.
    acc_ref[...] += jnp.dot(
        x_ref[...], w1_ref[...], preferred_element_type=jnp.float32
    )

    @pl.when(k == pl.num_programs(1) - 1)
    def _():
        h = jnp.maximum(acc_ref[...] + b1_ref[...], 0.0)          # bias + ReLU (VPU)
        scores = (
            jnp.dot(h, w2_ref[...], preferred_element_type=jnp.float32)
            + b2_ref[...]
        )
        out_ref[...] = scores.astype(out_ref.dtype)


def two_layer_fc(x_nchw, w1, b1, w2, b2, *, tm=None, tk=None):
    """Forward pass of TwoLayerFC.

    x_nchw: (N, C, H, W) float32 — flattened to (N, C*H*W) like torch .view(N, -1).
    Weights follow the PyTorch nn.Linear layout: w1 (hidden, in), w2 (classes, hidden).
    They are transposed once here in the wrapper, never inside the kernel.
    """
    N = x_nchw.shape[0]
    x_flat = x_nchw.reshape(N, -1).astype(jnp.float32)
    D = x_flat.shape[1]
    H = w1.shape[0]
    C = w2.shape[0]

    LANE = 128
    Hp = _round_up(H, LANE)          # lane/MXU-aligned hidden width
    Cp = _round_up(C, LANE)          # lane-dense output (no masked partial stores)

    # Row tile: >= 8 (sublane), <= 256 (MXU-friendly, cheap in VMEM).
    if tm is None:
        tm = min(256, _round_up(N, 8))
    tm = _round_up(tm, 8)
    Np = _round_up(N, tm)

    # Reduction tile over the flattened-input dim D.
    if tk is None:
        tk = min(512, _round_up(D, LANE))
    tk = _round_up(tk, LANE)
    Dp = _round_up(D, tk)

    # Zero-pad once in the wrapper: zeros are neutral for both matmuls and
    # ReLU(0 + 0) = 0 feeds zero columns into fc2, so results are unchanged.
    x_p = jnp.zeros((Np, Dp), jnp.float32).at[:N, :D].set(x_flat)
    w1t = jnp.zeros((Dp, Hp), jnp.float32).at[:D, :H].set(w1.T)   # (in, out)
    b1p = jnp.zeros((1, Hp), jnp.float32).at[0, :H].set(b1)
    w2t = jnp.zeros((Hp, Cp), jnp.float32).at[:H, :C].set(w2.T)   # (in, out)
    b2p = jnp.zeros((1, Cp), jnp.float32).at[0, :C].set(b2)

    grid = (Np // tm, Dp // tk)

    # VMEM budget: double-buffered streaming tiles + resident constants +
    # accumulator + output tile, with headroom.  Keeps v7x (64 MiB VMEM) safe.
    f32 = 4
    vmem_est = f32 * (
        2 * tm * tk                     # x tile (double-buffered)
        + 2 * tk * Hp                   # w1 tile (double-buffered)
        + 2 * (Hp + Hp * Cp + Cp)       # b1 / w2 / b2 (worst-case buffering)
        + tm * Hp                       # accumulator scratch
        + 2 * tm * Cp                   # output tile
    )
    vmem_limit = int(min(max(2 * vmem_est, 4 * 1024 * 1024), 64 * 1024 * 1024))

    out_p = pl.pallas_call(
        _two_layer_fc_kernel,
        out_shape=jax.ShapeDtypeStruct((Np, Cp), jnp.float32),
        grid_spec=pltpu.PrefetchScalarGridSpec(
            num_scalar_prefetch=0,
            grid=grid,
            in_specs=[
                pl.BlockSpec((tm, tk), lambda i, k: (i, k)),   # x (streamed)
                pl.BlockSpec((tk, Hp), lambda i, k: (k, 0)),   # w1t (streamed over k)
                pl.BlockSpec((1, Hp), lambda i, k: (0, 0)),    # b1 (resident)
                pl.BlockSpec((Hp, Cp), lambda i, k: (0, 0)),   # w2t (resident)
                pl.BlockSpec((1, Cp), lambda i, k: (0, 0)),    # b2 (resident)
            ],
            out_specs=pl.BlockSpec((tm, Cp), lambda i, k: (i, 0)),
            scratch_shapes=[pltpu.VMEM((tm, Hp), jnp.float32)],
        ),
        compiler_params=pltpu.CompilerParams(
            dimension_semantics=("parallel", "arbitrary"),
            vmem_limit_bytes=vmem_limit,
        ),
    )(x_p, w1t, b1p, w2t, b2p)

    # TODO(synk): optional bf16 streaming of x / W1 (f32 accumulation kept) for
    # bandwidth-bound cases; kept f32 here to match the PyTorch reference exactly.
    return out_p[:N, :C]


def init_params(key, input_size, hidden_size, num_classes):
    """Deterministic init mirroring the PyTorch module:
    kaiming_normal_ on weights (fan_in mode, gain sqrt(2)),
    default nn.Linear uniform(-1/sqrt(fan_in), 1/sqrt(fan_in)) on biases."""
    k1, k2, k3, k4 = jax.random.split(key, 4)
    w1 = jax.random.normal(k1, (hidden_size, input_size), jnp.float32) * jnp.sqrt(
        2.0 / input_size
    )
    b1 = jax.random.uniform(
        k2, (hidden_size,), jnp.float32,
        minval=-1.0 / jnp.sqrt(input_size), maxval=1.0 / jnp.sqrt(input_size)
    )
    w2 = jax.random.normal(k3, (num_classes, hidden_size), jnp.float32) * jnp.sqrt(
        2.0 / hidden_size
    )
    b2 = jax.random.uniform(
        k4, (num_classes,), jnp.float32,
        minval=-1.0 / jnp.sqrt(hidden_size), maxval=1.0 / jnp.sqrt(hidden_size)
    )
    return w1, b1, w2, b2


if __name__ == "__main__":
    key = jax.random.PRNGKey(0)
    kx, kp = jax.random.split(key)

    # Small shapes consistent with the module: x is an NCHW image batch,
    # flattened by forward() -> input_size = C*H*W.
    N, C, Hs, Ws = 2, 4, 16, 16
    input_size = C * Hs * Ws        # 1024
    hidden_size = 32
    num_classes = 10

    x = jax.random.normal(kx, (N, C, Hs, Ws), jnp.float32)
    w1, b1, w2, b2 = init_params(kp, input_size, hidden_size, num_classes)

    scores = two_layer_fc(x, w1, b1, w2, b2)
    jax.block_until_ready(scores)

    # Reference check in plain JAX (same math as the PyTorch module).
    x_flat = x.reshape(N, -1)
    ref = jnp.maximum(x_flat @ w1.T + b1, 0.0) @ w2.T + b2
    assert scores.shape == (N, num_classes)
    assert jnp.allclose(scores, ref, atol=1e-4, rtol=1e-4)

    print("KERNEL_OK")
</pallas_src>

<mosaic_0001>
module attributes {stable_mosaic.version = 11 : i64} {
  func.func @_two_layer_fc_kernel(%arg0: i32, %arg1: i32, %arg2: memref<8x512xf32, #tpu.memory_space<vmem>>, %arg3: memref<512x128xf32, #tpu.memory_space<vmem>>, %arg4: memref<1x128xf32, #tpu.memory_space<vmem>>, %arg5: memref<128x128xf32, #tpu.memory_space<vmem>>, %arg6: memref<1x128xf32, #tpu.memory_space<vmem>>, %arg7: memref<8x128xf32, #tpu.memory_space<vmem>>, %arg8: memref<8x128xf32, #tpu.memory_space<vmem>>) attributes {dimension_semantics = [#tpu.dimension_semantics<parallel>, #tpu.dimension_semantics<arbitrary>], iteration_bounds = array<i64: 1, 2>, scalar_prefetch = 0 : i64, scratch_operands = 1 : i64, tpu.core_type = #tpu.core_type<tc>, window_params = [{transform_indices = @transform_0, window_bounds = array<i64: 8, 512>}, {transform_indices = @transform_1, window_bounds = array<i64: 512, 128>}, {pipeline_mode = #tpu.pipeline_mode<synchronous>, transform_indices = @transform_2, window_bounds = array<i64: 1, 128>}, {pipeline_mode = #tpu.pipeline_mode<synchronous>, transform_indices = @transform_3, window_bounds = array<i64: 128, 128>}, {pipeline_mode = #tpu.pipeline_mode<synchronous>, transform_indices = @transform_4, window_bounds = array<i64: 1, 128>}, {transform_indices = @transform_5, window_bounds = array<i64: 8, 128>}]} {
    %c0_i32 = arith.constant 0 : i32
    %0 = arith.cmpi eq, %arg1, %c0_i32 : i32
    %1 = arith.extui %0 : i1 to i32
    %c0_i32_0 = arith.constant 0 : i32
    %2 = arith.cmpi ne, %1, %c0_i32_0 : i32
    scf.if %2 {
      %cst_9 = arith.constant 0.000000e+00 : f32
      %12 = vector.broadcast %cst_9 : f32 to vector<8x128xf32>
      %c0_10 = arith.constant 0 : index
      %c0_11 = arith.constant 0 : index
      %13 = vector.load %arg8[%c0_10, %c0_11] : memref<8x128xf32, #tpu.memory_space<vmem>>, vector<8x128xf32>
      tpu.vector_store %arg8[%c0_10, %c0_11], %12 {strides = array<i32>} : memref<8x128xf32, #tpu.memory_space<vmem>>, vector<8x128xf32>,
    } else {
    }
    %c0 = arith.constant 0 : index
    %c0_1 = arith.constant 0 : index
    %3 = vector.load %arg8[%c0, %c0_1] : memref<8x128xf32, #tpu.memory_space<vmem>>, vector<8x128xf32>
    %c0_2 = arith.constant 0 : index
    %c0_3 = arith.constant 0 : index
    %4 = vector.load %arg2[%c0_2, %c0_3] : memref<8x512xf32, #tpu.memory_space<vmem>>, vector<8x512xf32>
    %c0_4 = arith.constant 0 : index
    %c0_5 = arith.constant 0 : index
    %5 = vector.load %arg3[%c0_4, %c0_5] : memref<512x128xf32, #tpu.memory_space<vmem>>, vector<512x128xf32>
    %cst = arith.constant dense<0.000000e+00> : vector<8x128xf32>
    %6 = tpu.matmul %4, %5, %cst {dimension_numbers = #tpu.dot_dimension_numbers<[1], [0], [0], [1], [0, 0, 1, 1], [], []>} : vector<8x512xf32>, vector<512x128xf32>, vector<8x128xf32> -> vector<8x128xf32>
    %7 = arith.addf %3, %6 : vector<8x128xf32>
    %c0_6 = arith.constant 0 : index
    %c0_7 = arith.constant 0 : index
    %8 = vector.load %arg8[%c0_6, %c0_7] : memref<8x128xf32, #tpu.memory_space<vmem>>, vector<8x128xf32>
    tpu.vector_store %arg8[%c0_6, %c0_7], %7 {strides = array<i32>} : memref<8x128xf32, #tpu.memory_space<vmem>>, vector<8x128xf32>,
    %c1_i32 = arith.constant 1 : i32
    %9 = arith.cmpi eq, %arg1, %c1_i32 : i32
    %10 = arith.extui %9 : i1 to i32
    %c0_i32_8 = arith.constant 0 : i32
    %11 = arith.cmpi ne, %10, %c0_i32_8 : i32
    scf.if %11 {
      %c0_9 = arith.constant 0 : index
      %c0_10 = arith.constant 0 : index
      %12 = vector.load %arg8[%c0_9, %c0_10] : memref<8x128xf32, #tpu.memory_space<vmem>>, vector<8x128xf32>
      %c0_11 = arith.constant 0 : index
      %c0_12 = arith.constant 0 : index
      %13 = vector.load %arg4[%c0_11, %c0_12] : memref<1x128xf32, #tpu.memory_space<vmem>>, vector<1x128xf32>
      %14 = vector.broadcast %13 : vector<1x128xf32> to vector<8x128xf32>
      %15 = arith.addf %12, %14 : vector<8x128xf32>
      %cst_13 = arith.constant 0.000000e+00 : f32
      %16 = vector.broadcast %cst_13 : f32 to vector<8x128xf32>
      %17 = arith.maximumf %15, %16 : vector<8x128xf32>
      %c0_14 = arith.constant 0 : index
      %c0_15 = arith.constant 0 : index
      %18 = vector.load %arg5[%c0_14, %c0_15] : memref<128x128xf32, #tpu.memory_space<vmem>>, vector<128x128xf32>
      %cst_16 = arith.constant dense<0.000000e+00> : vector<8x128xf32>
      %19 = tpu.matmul %17, %18, %cst_16 {dimension_numbers = #tpu.dot_dimension_numbers<[1], [0], [0], [1], [0, 0, 1, 1], [], []>} : vector<8x128xf32>, vector<128x128xf32>, vector<8x128xf32> -> vector<8x128xf32>
      %c0_17 = arith.constant 0 : index
      %c0_18 = arith.constant 0 : index
      %20 = vector.load %arg6[%c0_17, %c0_18] : memref<1x128xf32, #tpu.memory_space<vmem>>, vector<1x128xf32>
      %21 = vector.broadcast %20 : vector<1x128xf32> to vector<8x128xf32>
      %22 = arith.addf %19, %21 : vector<8x128xf32>
      %c0_19 = arith.constant 0 : index
      %c0_20 = arith.constant 0 : index
      %23 = vector.load %arg7[%c0_19, %c0_20] : memref<8x128xf32, #tpu.memory_space<vmem>>, vector<8x128xf32>
      tpu.vector_store %arg7[%c0_19, %c0_20], %22 {strides = array<i32>} : memref<8x128xf32, #tpu.memory_space<vmem>>, vector<8x128xf32>,
    } else {
    }
    return
  }
  func.func @transform_0(%arg0: i32, %arg1: i32) -> (i32, i32) {
    %c0_i32 = arith.constant 0 : i32
    return %arg0, %arg1 : i32, i32
  }
  func.func @transform_1(%arg0: i32, %arg1: i32) -> (i32, i32) {
    %c0_i32 = arith.constant 0 : i32
    %c0_i32_0 = arith.constant 0 : i32
    return %arg1, %c0_i32 : i32, i32
  }
  func.func @transform_2(%arg0: i32, %arg1: i32) -> (i32, i32) {
    %c0_i32 = arith.constant 0 : i32
    %c0_i32_0 = arith.constant 0 : i32
    %c0_i32_1 = arith.constant 0 : i32
    return %c0_i32, %c0_i32_0 : i32, i32
  }
  func.func @transform_3(%arg0: i32, %arg1: i32) -> (i32, i32) {
    %c0_i32 = arith.constant 0 : i32
    %c0_i32_0 = arith.constant 0 : i32
    %c0_i32_1 = arith.constant 0 : i32
    return %c0_i32, %c0_i32_0 : i32, i32
  }
  func.func @transform_4(%arg0: i32, %arg1: i32) -> (i32, i32) {
    %c0_i32 = arith.constant 0 : i32
    %c0_i32_0 = arith.constant 0 : i32
    %c0_i32_1 = arith.constant 0 : i32
    return %c0_i32, %c0_i32_0 : i32, i32
  }
  func.func @transform_5(%arg0: i32, %arg1: i32) -> (i32, i32) {
    %c0_i32 = arith.constant 0 : i32
    %c0_i32_0 = arith.constant 0 : i32
    return %arg0, %c0_i32 : i32, i32
  }
}

</mosaic_0001>

<llo_original>
// kernel: tpu_custom_call.1
$region0: #{tpu_custom_call.1}
  #allocation0 [shape = 'u32[]', space=smem, size = 0x4, offset = 0x4, fixed_abs, tag = 'smem constant byte address 0x4 - core index']
  #allocation1 [shape = 'u32[72,128]{1,0:T(1,128)}', space=vmem, size = 0x9000, scoped, tag = 'internal scratch']
  #allocation2 [shape = 'f32[8,128]{1,0:T(8,128)}', space=vmem, size = 0x1000, scoped, tag = 'scratch operand']
  %s0 = inlined_call_operand.hbm [shape: f32[8,1024], index: 0, kind: input, shape index: {}]
  %s1 = inlined_call_operand.hbm [shape: f32[1024,128], index: 1, kind: input, shape index: {}]
  %s2 = inlined_call_operand.vmem [shape: f32[1,128], index: 2, kind: input, shape index: {}]
  %s3 = inlined_call_operand.hbm [shape: f32[128,128], index: 3, kind: input, shape index: {}]
  %s4 = inlined_call_operand.vmem [shape: f32[1,128], index: 4, kind: input, shape index: {}]
  %s5 = inlined_call_operand.hbm [shape: f32[8,128], index: 5, kind: output, shape index: {}]
  %s6 = sld [smem:[#allocation0]]
  $region73: #{tpu_custom_call.1} parent=0
    _
  %s8 = ssub.s32 1, %s6
  %s9 = scalar_select 0, %s8, %s6
  $region1: #{tpu_custom_call.1} parent=0
    #allocation3 [shape = 'u8[32768]{0}', space=vmem, size = 0x8000, scoped, tag = 'input window, operand 0']
    #allocation4 [shape = 's32[2]{0}', space=sflag, size = 0x8, scoped, tag = 'scoped memory for tpu_custom_call.1']
    #allocation5 [shape = 's32[2]{0}', space=sflag, size = 0x8, scoped, tag = 'scoped memory for tpu_custom_call.1']
    #allocation6 [shape = 'u8[524288]{0}', space=vmem, size = 0x80000, scoped, tag = 'input window, operand 1']
    #allocation7 [shape = 's32[2]{0}', space=sflag, size = 0x8, scoped, tag = 'scoped memory for tpu_custom_call.1']
    #allocation8 [shape = 'u8[65536]{0}', space=vmem, size = 0x10000, scoped, tag = 'input window, operand 3, single buffered']
    #allocation9 [shape = 'u8[4096]{0}', space=vmem, size = 0x1000, scoped, tag = 'output window, operand 0, single buffered']
    %10 = vsyncpa [#allocation4], 0
    %s11 = scalar_lea.sflag [#allocation4], 1
    %12 = vsyncpa %s11, 0
    %13 = vsyncpa [#allocation7], 0
    %s14 = scalar_lea.sflag [#allocation7], 1
    %15 = vsyncpa %s14, 0
    %16 = vsyncpa [#allocation5], 0
    loop: start=0, step=1, limit=4
    $region2: #{tpu_custom_call.1} parent=1 // loop_pre_header
      _
    $region3: #{tpu_custom_call.1} parent=1 // loop_header
      %s18 = sphi 0, %s22
      %p19 = scmp.ge.s32.totalorder %s18, 4
      %s25 = sphi 0, %s37
      %s26 = sphi 0, %s33
      %s27 = sphi 0, %s25
      %s28 = sphi 0, %s26
      %s29 = sphi 0, %s27
      %s30 = sphi 0, %s28
      %s42 = sphi 0, %s44
      %s45 = sphi 0, %s42
      %s46 = sphi 0, %s45
      %s62 = sphi 0, %s46
      %s68 = sphi 0, %s70
      %s71 = sphi 0, %s68
      %s72 = sphi 0, %s71
      %s88 = sphi 0, %s72
      %s92 = sphi 0, %s92
      %s94 = sphi 0, %s92
      %s95 = sphi 0, %s94
      %s109 = sphi 0, %s95
      %s113 = sphi 0, %s113
      %s115 = sphi 0, %s113
      %s116 = sphi 0, %s115
      %s130 = sphi 0, %s116
      %s134 = sphi 0, %s134
      %s136 = sphi 0, %s134
      %s137 = sphi 0, %s136
      %s151 = sphi 0, %s137
      %s157 = sphi 0, %s159
      %s160 = sphi 0, %s157
      %s161 = sphi 0, %s160
      %s177 = sphi 0, %s161
    $region4: #{tpu_custom_call.1} parent=1 // loop_header_branch
      %21 = sbr.rel (%p19) target = $region8
    $region5: #{tpu_custom_call.1} parent=1 // loop_body
      %s23 = ssub.s32 %s18, 1
      %s24 = ssub.s32 %s18, 2
      %s31 = sadd.s32 1, %s26
      %p32 = scmp.ge.s32.totalorder %s31, 2
      %s33 = scalar_select %p32, 0, %s31
      %s34 = sadd.s32 1, %s25
      %s35 = scalar_select %p32, %s34, %s25
      %p36 = scmp.ge.s32.totalorder %s35, 1
      %s37 = scalar_select %p36, 0, %s35
      %s38 = ssub.s32 %s25, %s37
      %s39 = ssub.s32 %s26, %s33
      %s40 = sor.u32 %s38, %s39
      %p41 = scmp.eq.s32.totalorder %s40, 0
      %s43 = sadd.s32 %s42, 1
      %s44 = scalar_select %p41, %s42, %s43
      %p47 = pneg %p41
      %p48 = scmp.eq.s32.totalorder %s18, 1
      %p49 = por %p47, %p48
      %p50 = scmp.ne.s32.totalorder %s42, %s45
      %p51 = scmp.eq.s32.totalorder %s18, 0
      %p52 = por %p50, %p51
      %p53 = scmp.ne.s32.totalorder %s42, %s45
      %p54 = scmp.eq.s32.totalorder %s23, 1
      %p55 = por %p53, %p54
      %p56 = scmp.ne.s32.totalorder %s45, %s46
      %p57 = scmp.eq.s32.totalorder %s23, 0
      %p58 = por %p56, %p57
      %p59 = scmp.ne.s32.totalorder %s45, %s46
      %p60 = scmp.eq.s32.totalorder %s24, 1
      %p61 = por %p59, %p60
      %p63 = scmp.ne.s32.totalorder %s46, %s62
      %p64 = scmp.eq.s32.totalorder %s24, 0
      %p65 = por %p63, %p64
      %s66 = ssub.s32 %s26, %s33
      %p67 = scmp.eq.s32.totalorder %s66, 0
      %s69 = sadd.s32 %s68, 1
      %s70 = scalar_select %p67, %s68, %s69
      %p73 = pneg %p67
      %p74 = scmp.eq.s32.totalorder %s18, 1
      %p75 = por %p73, %p74
      %p76 = scmp.ne.s32.totalorder %s68, %s71
      %p77 = scmp.eq.s32.totalorder %s18, 0
      %p78 = por %p76, %p77
      %p79 = scmp.ne.s32.totalorder %s68, %s71
      %p80 = scmp.eq.s32.totalorder %s23, 1
      %p81 = por %p79, %p80
      %p82 = scmp.ne.s32.totalorder %s71, %s72
      %p83 = scmp.eq.s32.totalorder %s23, 0
      %p84 = por %p82, %p83
      %p85 = scmp.ne.s32.totalorder %s71, %s72
      %p86 = scmp.eq.s32.totalorder %s24, 1
      %p87 = por %p85, %p86
      %p89 = scmp.ne.s32.totalorder %s72, %s88
      %p90 = scmp.eq.s32.totalorder %s24, 0
      %p91 = por %p89, %p90
      %s93 = sadd.s32 %s92, 1
      %p96 = scmp.eq.s32.totalorder %s18, 1
      %p97 = scmp.ne.s32.totalorder %s92, %s94
      %p98 = scmp.eq.s32.totalorder %s18, 0
      %p99 = por %p97, %p98
      %p100 = scmp.ne.s32.totalorder %s92, %s94
      %p101 = scmp.eq.s32.totalorder %s23, 1
      %p102 = por %p100, %p101
      %p103 = scmp.ne.s32.totalorder %s94, %s95
      %p104 = scmp.eq.s32.totalorder %s23, 0
      %p105 = por %p103, %p104
      %p106 = scmp.ne.s32.totalorder %s94, %s95
      %p107 = scmp.eq.s32.totalorder %s24, 1
      %p108 = por %p106, %p107
      %p110 = scmp.ne.s32.totalorder %s95, %s109
      %p111 = scmp.eq.s32.totalorder %s24, 0
      %p112 = por %p110, %p111
      %s114 = sadd.s32 %s113, 1
      %p117 = scmp.eq.s32.totalorder %s18, 1
      %p118 = scmp.ne.s32.totalorder %s113, %s115
      %p119 = scmp.eq.s32.totalorder %s18, 0
      %p120 = por %p118, %p119
      %p121 = scmp.ne.s32.totalorder %s113, %s115
      %p122 = scmp.eq.s32.totalorder %s23, 1
      %p123 = por %p121, %p122
      %p124 = scmp.ne.s32.totalorder %s115, %s116
      %p125 = scmp.eq.s32.totalorder %s23, 0
      %p126 = por %p124, %p125
      %p127 = scmp.ne.s32.totalorder %s115, %s116
      %p128 = scmp.eq.s32.totalorder %s24, 1
      %p129 = por %p127, %p128
      %p131 = scmp.ne.s32.totalorder %s116, %s130
      %p132 = scmp.eq.s32.totalorder %s24, 0
      %p133 = por %p131, %p132
      %s135 = sadd.s32 %s134, 1
      %p138 = scmp.eq.s32.totalorder %s18, 1
      %p139 = scmp.ne.s32.totalorder %s134, %s136
      %p140 = scmp.eq.s32.totalorder %s18, 0
      %p141 = por %p139, %p140
      %p142 = scmp.ne.s32.totalorder %s134, %s136
      %p143 = scmp.eq.s32.totalorder %s23, 1
      %p144 = por %p142, %p143
      %p145 = scmp.ne.s32.totalorder %s136, %s137
      %p146 = scmp.eq.s32.totalorder %s23, 0
      %p147 = por %p145, %p146
      %p148 = scmp.ne.s32.totalorder %s136, %s137
      %p149 = scmp.eq.s32.totalorder %s24, 1
      %p150 = por %p148, %p149
      %p152 = scmp.ne.s32.totalorder %s137, %s151
      %p153 = scmp.eq.s32.totalorder %s24, 0
      %p154 = por %p152, %p153
      %s155 = ssub.s32 %s25, %s37
      %p156 = scmp.eq.s32.totalorder %s155, 0
      %s158 = sadd.s32 %s157, 1
      %s159 = scalar_select %p156, %s157, %s158
      %p162 = pneg %p156
      %p163 = scmp.eq.s32.totalorder %s18, 1
      %p164 = por %p162, %p163
      %p165 = scmp.ne.s32.totalorder %s157, %s160
      %p166 = scmp.eq.s32.totalorder %s18, 0
      %p167 = por %p165, %p166
      %p168 = scmp.ne.s32.totalorder %s157, %s160
      %p169 = scmp.eq.s32.totalorder %s23, 1
      %p170 = por %p168, %p169
      %p171 = scmp.ne.s32.totalorder %s160, %s161
      %p172 = scmp.eq.s32.totalorder %s23, 0
      %p173 = por %p171, %p172
      %p174 = scmp.ne.s32.totalorder %s160, %s161
      %p175 = scmp.eq.s32.totalorder %s24, 1
      %p176 = por %p174, %p175
      %p178 = scmp.ne.s32.totalorder %s161, %s177
      %p179 = scmp.eq.s32.totalorder %s24, 0
      %p180 = por %p178, %p179
      %p181 = scmp.le.s32.totalorder 1, %s18
      %p182 = scmp.lt.s32.totalorder %s18, 3
      %p183 = pnand %p181, %p182
      %p184 = pneg %p183
      // Predicated region
      $region9: #{tpu_custom_call.1} parent=5 // pred_check
        _
      $region10: #{tpu_custom_call.1} parent=5 // pred_check_branch
        %186 = sbr.rel (%p183) target = $region12
      $region11: #{tpu_custom_call.1} parent=5 // pred_region
        %s187 = ssub.s32 %s18, 1
        // Predicated region
        $region13: #{tpu_custom_call.1} parent=11 // pred_check
          %p188 = pneg %p105
        $region14: #{tpu_custom_call.1} parent=11 // pred_check_branch
          %190 = sbr.rel (%p188) target = $region16
        $region15: #{tpu_custom_call.1} parent=11 // pred_region
          _
        $region16: #{tpu_custom_call.1} parent=11 // pred_fallthru
          _
        // Predicated region
        $region17: #{tpu_custom_call.1} parent=11 // pred_check
          %p191 = pneg %p126
        $region18: #{tpu_custom_call.1} parent=11 // pred_check_branch
          %193 = sbr.rel (%p191) target = $region20
        $region19: #{tpu_custom_call.1} parent=11 // pred_region
          %195 = vsyncadd [#allocation7], 0
          %s196 = sshll.u32 %s3, 4
          %s197 = int_to_ptr.hbm [resolvable:$true] %s196
          %s198 = sshll.u32 [#allocation8], 4
          %s199 = int_to_ptr.vmem [resolvable:$true] %s198
          %204 = dma.hbm_to_vmem [thread:$0]  %s197, 2048, %s199, [#allocation7], 128, 128, 8
        $region20: #{tpu_custom_call.1} parent=11 // pred_fallthru
          _
        // Predicated region
        $region21: #{tpu_custom_call.1} parent=11 // pred_check
          %p205 = pneg %p147
        $region22: #{tpu_custom_call.1} parent=11 // pred_check_branch
          %207 = sbr.rel (%p205) target = $region24
        $region23: #{tpu_custom_call.1} parent=11 // pred_region
          _
        $region24: #{tpu_custom_call.1} parent=11 // pred_fallthru
          _
      $region12: #{tpu_custom_call.1} parent=5 // pred_fallthru
        _
      %p208 = scmp.lt.s32.totalorder %s18, 2
      // Predicated region
      $region25: #{tpu_custom_call.1} parent=5 // pred_check
        %p209 = pneg %p208
      $region26: #{tpu_custom_call.1} parent=5 // pred_check_branch
        %211 = sbr.rel (%p209) target = $region28
      $region27: #{tpu_custom_call.1} parent=5 // pred_region
        // Predicated region
        $region29: #{tpu_custom_call.1} parent=27 // pred_check
          %p212 = pneg %p52
        $region30: #{tpu_custom_call.1} parent=27 // pred_check_branch
          %214 = sbr.rel (%p212) target = $region32
        $region31: #{tpu_custom_call.1} parent=27 // pred_region
          %s215 = sand.u32 %s42, 1
          %s216 = scalar_lea.sflag [#allocation4], %s215
          %s217 = sand.u32 %s42, 1
          %s218 = smul.addr %s217, 32
          %s219 = scalar_lea.vmem [#allocation3], %s218
          %s220 = smul.u32 4, %s26
          %222 = vsyncadd %s216, 0
          %s223 = smul.addr %s25, 8
          %s224 = sadd.s32 %s220, %s223
          %s225 = smul.addr %s224, 8
          %s226 = scalar_lea.hbm %s0, %s225
          %s228 = sshll.u32 %s226, 4
          %s229 = int_to_ptr.hbm [resolvable:$true] %s228
          %s230 = sshll.u32 %s219, 4
          %s231 = int_to_ptr.vmem [resolvable:$true] %s230
          %233 = dma.hbm_to_vmem [thread:$0]  %s229, 512, %s231, %s216
        $region32: #{tpu_custom_call.1} parent=27 // pred_fallthru
          _
        // Predicated region
        $region33: #{tpu_custom_call.1} parent=27 // pred_check
          %p234 = pneg %p78
        $region34: #{tpu_custom_call.1} parent=27 // pred_check_branch
          %236 = sbr.rel (%p234) target = $region36
        $region35: #{tpu_custom_call.1} parent=27 // pred_region
          %s237 = sand.u32 %s18, 1
          %s238 = scalar_lea.sflag [#allocation7], %s237
          %s239 = sand.u32 %s68, 1
          %s240 = smul.addr %s239, 512
          %s241 = scalar_lea.vmem [#allocation6], %s240
          %s242 = smul.u32 64, %s26
          %244 = vsyncadd %s238, 0
          %s245 = smul.addr %s242, 8
          %s246 = scalar_lea.hbm %s1, %s245
          %s247 = sshll.u32 %s246, 4
          %s248 = int_to_ptr.hbm [resolvable:$true] %s247
          %s249 = sshll.u32 %s241, 4
          %s250 = int_to_ptr.vmem [resolvable:$true] %s249
          %255 = dma.hbm_to_vmem [thread:$0]  %s248, 8192, %s250, %s238, 128, 128, 8
        $region36: #{tpu_custom_call.1} parent=27 // pred_fallthru
          _
      $region28: #{tpu_custom_call.1} parent=5 // pred_fallthru
        _
      %p256 = scmp.le.s32.totalorder 1, %s18
      %p257 = scmp.lt.s32.totalorder %s18, 3
      %p258 = pnand %p256, %p257
      %p259 = pneg %p258
      // Predicated region
      $region37: #{tpu_custom_call.1} parent=5 // pred_check
        _
      $region38: #{tpu_custom_call.1} parent=5 // pred_check_branch
        %261 = sbr.rel (%p258) target = $region40
      $region39: #{tpu_custom_call.1} parent=5 // pred_region
        %s262 = ssub.s32 %s18, 1
        %s263 = sand.u32 %s45, 1
        %s264 = scalar_lea.sflag [#allocation4], %s263
        %s265 = sand.u32 %s45, 1
        %s266 = smul.addr %s265, 32
        %s267 = scalar_lea.vmem [#allocation3], %s266
        // Predicated region
        $region41: #{tpu_custom_call.1} parent=39 // pred_check
          %p268 = pneg %p58
        $region42: #{tpu_custom_call.1} parent=39 // pred_check_branch
          %270 = sbr.rel (%p268) target = $region44
        $region43: #{tpu_custom_call.1} parent=39 // pred_region
          %272 = dma.done %s264, 512
        $region44: #{tpu_custom_call.1} parent=39 // pred_fallthru
          _
        %s273 = sand.u32 %s23, 1
        %s274 = scalar_lea.sflag [#allocation7], %s273
        %s275 = sand.u32 %s71, 1
        %s276 = smul.addr %s275, 512
        %s277 = scalar_lea.vmem [#allocation6], %s276
        // Predicated region
        $region45: #{tpu_custom_call.1} parent=39 // pred_check
          %p278 = pneg %p84
        $region46: #{tpu_custom_call.1} parent=39 // pred_check_branch
          %280 = sbr.rel (%p278) target = $region48
        $region47: #{tpu_custom_call.1} parent=39 // pred_region
          %282 = dma.done %s274, 8192
        $region48: #{tpu_custom_call.1} parent=39 // pred_fallthru
          _
        // Predicated region
        $region49: #{tpu_custom_call.1} parent=39 // pred_check
          %p283 = pneg %p126
        $region50: #{tpu_custom_call.1} parent=39 // pred_check_branch
          %285 = sbr.rel (%p283) target = $region52
        $region51: #{tpu_custom_call.1} parent=39 // pred_region
          %287 = dma.done [#allocation7], 2048
        $region52: #{tpu_custom_call.1} parent=39 // pred_fallthru
          _
        %s288 = sand.u32 %s45, 1
        %s289 = scalar_lea.sflag [#allocation4], %s288
        %s290 = sand.u32 %s45, 1
        %s291 = smul.addr %s290, 32
        %s292 = scalar_lea.vmem [#allocation3], %s291
        %p293 = pneg %p58
        %p294 = pneg %p55
        %s295 = sand.u32 %s23, 1
        %s296 = scalar_lea.sflag [#allocation7], %s295
        %s297 = sand.u32 %s71, 1
        %s298 = smul.addr %s297, 512
        %s299 = scalar_lea.vmem [#allocation6], %s298
        %p300 = pneg %p84
        %p301 = pneg %p81
        %p302 = pneg %p105
        %p303 = pneg %p102
        %p304 = pneg %p126
        %p305 = pneg %p123
        %p306 = pneg %p147
        %p307 = pneg %p144
        %p308 = pneg %p173
        %p309 = pneg %p170
        %s310 = smul.u32 4, %s28
        %s311 = smul.u32 64, %s28
        %p312 = scmp.eq.s32.totalorder %s28, 0
        // Predicated region
        $region53: #{tpu_custom_call.1} parent=39 // pred_check
          %p313 = pneg %p312
        $region54: #{tpu_custom_call.1} parent=39 // pred_check_branch
          %315 = sbr.rel (%p313) target = $region56
        $region55: #{tpu_custom_call.1} parent=39 // pred_region
          %316 = vst [vmem:[#allocation2] sm:$0xff] 0.0
        $region56: #{tpu_custom_call.1} parent=39 // pred_fallthru
          _
        %v317 = vld [vmem:[#allocation2] sm:$0xff]
        %v318 = vld [vmem:[%s267] sm:$0xff]
        %v319 = vld [vmem:[%s267 + $0x8] sm:$0xff]
        %v320 = vld [vmem:[%s267 + $0x10] sm:$0xff]
        %v321 = vld [vmem:[%s267 + $0x18] sm:$0xff]
        %v322 = vld [vmem:[%s277] sm:$0xff]
        %v323 = vld [vmem:[%s277 + $0x8] sm:$0xff]
        %v324 = vld [vmem:[%s277 + $0x10] sm:$0xff]
        %v325 = vld [vmem:[%s277 + $0x18] sm:$0xff]
        %v326 = vld [vmem:[%s277 + $0x20] sm:$0xff]
        %v327 = vld [vmem:[%s277 + $0x28] sm:$0xff]
        %v328 = vld [vmem:[%s277 + $0x30] sm:$0xff]
        %v329 = vld [vmem:[%s277 + $0x38] sm:$0xff]
        %v330 = vld [vmem:[%s277 + $0x40] sm:$0xff]
        %v331 = vld [vmem:[%s277 + $0x48] sm:$0xff]
        %v332 = vld [vmem:[%s277 + $0x50] sm:$0xff]
        %v333 = vld [vmem:[%s277 + $0x58] sm:$0xff]
        %v334 = vld [vmem:[%s277 + $0x60] sm:$0xff]
        %v335 = vld [vmem:[%s277 + $0x68] sm:$0xff]
        %v336 = vld [vmem:[%s277 + $0x70] sm:$0xff]
        %v337 = vld [vmem:[%s277 + $0x78] sm:$0xff]
        %v338 = vld [vmem:[%s277 + $0x80] sm:$0xff]
        %v339 = vld [vmem:[%s277 + $0x88] sm:$0xff]
        %v340 = vld [vmem:[%s277 + $0x90] sm:$0xff]
        %v341 = vld [vmem:[%s277 + $0x98] sm:$0xff]
        %v342 = vld [vmem:[%s277 + $0xa0] sm:$0xff]
        %v343 = vld [vmem:[%s277 + $0xa8] sm:$0xff]
        %v344 = vld [vmem:[%s277 + $0xb0] sm:$0xff]
        %v345 = vld [vmem:[%s277 + $0xb8] sm:$0xff]
        %v346 = vld [vmem:[%s277 + $0xc0] sm:$0xff]
        %v347 = vld [vmem:[%s277 + $0xc8] sm:$0xff]
        %v348 = vld [vmem:[%s277 + $0xd0] sm:$0xff]
        %v349 = vld [vmem:[%s277 + $0xd8] sm:$0xff]
        %v350 = vld [vmem:[%s277 + $0xe0] sm:$0xff]
        %v351 = vld [vmem:[%s277 + $0xe8] sm:$0xff]
        %v352 = vld [vmem:[%s277 + $0xf0] sm:$0xff]
        %v353 = vld [vmem:[%s277 + $0xf8] sm:$0xff]
        %v354 = vld [vmem:[%s277 + $0x100] sm:$0xff]
        %v355 = vld [vmem:[%s277 + $0x108] sm:$0xff]
        %v356 = vld [vmem:[%s277 + $0x110] sm:$0xff]
        %v357 = vld [vmem:[%s277 + $0x118] sm:$0xff]
        %v358 = vld [vmem:[%s277 + $0x120] sm:$0xff]
        %v359 = vld [vmem:[%s277 + $0x128] sm:$0xff]
        %v360 = vld [vmem:[%s277 + $0x130] sm:$0xff]
        %v361 = vld [vmem:[%s277 + $0x138] sm:$0xff]
        %v362 = vld [vmem:[%s277 + $0x140] sm:$0xff]
        %v363 = vld [vmem:[%s277 + $0x148] sm:$0xff]
        %v364 = vld [vmem:[%s277 + $0x150] sm:$0xff]
        %v365 = vld [vmem:[%s277 + $0x158] sm:$0xff]
        %v366 = vld [vmem:[%s277 + $0x160] sm:$0xff]
        %v367 = vld [vmem:[%s277 + $0x168] sm:$0xff]
        %v368 = vld [vmem:[%s277 + $0x170] sm:$0xff]
        %v369 = vld [vmem:[%s277 + $0x178] sm:$0xff]
        %v370 = vld [vmem:[%s277 + $0x180] sm:$0xff]
        %v371 = vld [vmem:[%s277 + $0x188] sm:$0xff]
        %v372 = vld [vmem:[%s277 + $0x190] sm:$0xff]
        %v373 = vld [vmem:[%s277 + $0x198] sm:$0xff]
        %v374 = vld [vmem:[%s277 + $0x1a0] sm:$0xff]
        %v375 = vld [vmem:[%s277 + $0x1a8] sm:$0xff]
        %v376 = vld [vmem:[%s277 + $0x1b0] sm:$0xff]
        %v377 = vld [vmem:[%s277 + $0x1b8] sm:$0xff]
        %v378 = vld [vmem:[%s277 + $0x1c0] sm:$0xff]
        %v379 = vld [vmem:[%s277 + $0x1c8] sm:$0xff]
        %v380 = vld [vmem:[%s277 + $0x1d0] sm:$0xff]
        %v381 = vld [vmem:[%s277 + $0x1d8] sm:$0xff]
        %v382 = vld [vmem:[%s277 + $0x1e0] sm:$0xff]
        %v383 = vld [vmem:[%s277 + $0x1e8] sm:$0xff]
        %v384 = vld [vmem:[%s277 + $0x1f0] sm:$0xff]
        %v385 = vld [vmem:[%s277 + $0x1f8] sm:$0xff]
        %386 = vmatpush.msra.mxu0 %v337
        %387 = vmatpush.msra.mxu0 %v336
        %388 = vmatpush.msra.mxu0 %v335
        %389 = vmatpush.msra.mxu0 %v334
        %390 = vmatpush.msra.mxu0 %v333
        %391 = vmatpush.msra.mxu0 %v332
        %392 = vmatpush.msra.mxu0 %v331
        %393 = vmatpush.msra.mxu0 %v330
        %394 = vmatpush.msra.mxu0 %v329
        %395 = vmatpush.msra.mxu0 %v328
        %396 = vmatpush.msra.mxu0 %v327
        %397 = vmatpush.msra.mxu0 %v326
        %398 = vmatpush.msra.mxu0 %v325
        %399 = vmatpush.msra.mxu0 %v324
        %400 = vmatpush.msra.mxu0 %v323
        %401 = vmatpush.msra.mxu0 %v322
        %402 = vmatmul.f32.gmra.mxu0 %v318
        %v403 = vpop.f32.mrf.mxu0
        %v404 = vadd.f32 0.0, %v403
        %405 = vdwg.mxu0
        %406 = vmatpush.msra.mxu0 %v353
        %407 = vmatpush.msra.mxu0 %v352
        %408 = vmatpush.msra.mxu0 %v351
        %409 = vmatpush.msra.mxu0 %v350
        %410 = vmatpush.msra.mxu0 %v349
        %411 = vmatpush.msra.mxu0 %v348
        %412 = vmatpush.msra.mxu0 %v347
        %413 = vmatpush.msra.mxu0 %v346
        %414 = vmatpush.msra.mxu0 %v345
        %415 = vmatpush.msra.mxu0 %v344
        %416 = vmatpush.msra.mxu0 %v343
        %417 = vmatpush.msra.mxu0 %v342
        %418 = vmatpush.msra.mxu0 %v341
        %419 = vmatpush.msra.mxu0 %v340
        %420 = vmatpush.msra.mxu0 %v339
        %421 = vmatpush.msra.mxu0 %v338
        %422 = vmatmul.f32.gmra.mxu0 %v319
        %v423 = vpop.f32.mrf.mxu0
        %v424 = vadd.f32 %v404, %v423
        %425 = vdwg.mxu0
        %426 = vmatpush.msra.mxu0 %v369
        %427 = vmatpush.msra.mxu0 %v368
        %428 = vmatpush.msra.mxu0 %v367
        %429 = vmatpush.msra.mxu0 %v366
        %430 = vmatpush.msra.mxu0 %v365
        %431 = vmatpush.msra.mxu0 %v364
        %432 = vmatpush.msra.mxu0 %v363
        %433 = vmatpush.msra.mxu0 %v362
        %434 = vmatpush.msra.mxu0 %v361
        %435 = vmatpush.msra.mxu0 %v360
        %436 = vmatpush.msra.mxu0 %v359
        %437 = vmatpush.msra.mxu0 %v358
        %438 = vmatpush.msra.mxu0 %v357
        %439 = vmatpush.msra.mxu0 %v356
        %440 = vmatpush.msra.mxu0 %v355
        %441 = vmatpush.msra.mxu0 %v354
        %442 = vmatmul.f32.gmra.mxu0 %v320
        %v443 = vpop.f32.mrf.mxu0
        %v444 = vadd.f32 %v424, %v443
        %445 = vdwg.mxu0
        %446 = vmatpush.msra.mxu0 %v385
        %447 = vmatpush.msra.mxu0 %v384
        %448 = vmatpush.msra.mxu0 %v383
        %449 = vmatpush.msra.mxu0 %v382
        %450 = vmatpush.msra.mxu0 %v381
        %451 = vmatpush.msra.mxu0 %v380
        %452 = vmatpush.msra.mxu0 %v379
        %453 = vmatpush.msra.mxu0 %v378
        %454 = vmatpush.msra.mxu0 %v377
        %455 = vmatpush.msra.mxu0 %v376
        %456 = vmatpush.msra.mxu0 %v375
        %457 = vmatpush.msra.mxu0 %v374
        %458 = vmatpush.msra.mxu0 %v373
        %459 = vmatpush.msra.mxu0 %v372
        %460 = vmatpush.msra.mxu0 %v371
        %461 = vmatpush.msra.mxu0 %v370
        %462 = vmatmul.f32.gmra.mxu0 %v321
        %v463 = vpop.f32.mrf.mxu0
        %v464 = vadd.f32 %v444, %v463
        %465 = vdwg.mxu0
        %v466 = vadd.f32 %v317, %v464
        %467 = vst [vmem:[#allocation2] sm:$0xff] %v466
        %p468 = scmp.eq.s32.totalorder %s28, 1
        // Predicated region
        $region57: #{tpu_custom_call.1} parent=39 // pred_check
          %p469 = pneg %p468
        $region58: #{tpu_custom_call.1} parent=39 // pred_check_branch
          %471 = sbr.rel (%p469) target = $region60
        $region59: #{tpu_custom_call.1} parent=39 // pred_region
          %v472 = vld [vmem:[#allocation2] sm:$0xff]
          %v473 = vld [vmem:[%s2] sm:$0x1]
          %v475 = vperm.slane %v473, 0
          %v477 = vadd.f32 %v472, %v475
          %v478 = vmax.f32 %v477, 0.0
          %v479 = vld [vmem:[#allocation8] sm:$0xff]
          %v480 = vld [vmem:[#allocation8 + $0x8] sm:$0xff]
          %v481 = vld [vmem:[#allocation8 + $0x10] sm:$0xff]
          %v482 = vld [vmem:[#allocation8 + $0x18] sm:$0xff]
          %v483 = vld [vmem:[#allocation8 + $0x20] sm:$0xff]
          %v484 = vld [vmem:[#allocation8 + $0x28] sm:$0xff]
          %v485 = vld [vmem:[#allocation8 + $0x30] sm:$0xff]
          %v486 = vld [vmem:[#allocation8 + $0x38] sm:$0xff]
          %v487 = vld [vmem:[#allocation8 + $0x40] sm:$0xff]
          %v488 = vld [vmem:[#allocation8 + $0x48] sm:$0xff]
          %v489 = vld [vmem:[#allocation8 + $0x50] sm:$0xff]
          %v490 = vld [vmem:[#allocation8 + $0x58] sm:$0xff]
          %v491 = vld [vmem:[#allocation8 + $0x60] sm:$0xff]
          %v492 = vld [vmem:[#allocation8 + $0x68] sm:$0xff]
          %v493 = vld [vmem:[#allocation8 + $0x70] sm:$0xff]
          %v494 = vld [vmem:[#allocation8 + $0x78] sm:$0xff]
          %v495 = vld [vmem:[%s4] sm:$0x1]
          %v497 = vperm.slane %v495, 0
          %499 = vmatpush.msra.mxu0 %v494
          %500 = vmatpush.msra.mxu0 %v493
          %501 = vmatpush.msra.mxu0 %v492
          %502 = vmatpush.msra.mxu0 %v491
          %503 = vmatpush.msra.mxu0 %v490
          %504 = vmatpush.msra.mxu0 %v489
          %505 = vmatpush.msra.mxu0 %v488
          %506 = vmatpush.msra.mxu0 %v487
          %507 = vmatpush.msra.mxu0 %v486
          %508 = vmatpush.msra.mxu0 %v485
          %509 = vmatpush.msra.mxu0 %v484
          %510 = vmatpush.msra.mxu0 %v483
          %511 = vmatpush.msra.mxu0 %v482
          %512 = vmatpush.msra.mxu0 %v481
          %513 = vmatpush.msra.mxu0 %v480
          %514 = vmatpush.msra.mxu0 %v479
          %515 = vmatmul.f32.gmra.mxu0 %v478
          %v516 = vpop.f32.mrf.mxu0
          %v517 = vadd.f32 %v497, %v516
          %518 = vdwg.mxu0
          %519 = vst [vmem:[#allocation9] sm:$0xff] %v517
        $region60: #{tpu_custom_call.1} parent=39 // pred_fallthru
          _
        // Predicated region
        $region61: #{tpu_custom_call.1} parent=39 // pred_check
          %p520 = pneg %p170
        $region62: #{tpu_custom_call.1} parent=39 // pred_check_branch
          %522 = sbr.rel (%p520) target = $region64
        $region63: #{tpu_custom_call.1} parent=39 // pred_region
          %524 = vsyncadd [#allocation5], 0
          %s525 = smul.addr %s27, 8
          %s526 = scalar_lea.hbm %s5, %s525
          %s528 = sshll.u32 [#allocation9], 4
          %s529 = int_to_ptr.vmem [resolvable:$true] %s528
          %s530 = sshll.u32 %s526, 4
          %s531 = int_to_ptr.hbm [resolvable:$true] %s530
          %533 = dma.vmem_to_hbm [thread:$0]  %s529, 128, %s531, [#allocation5]
        $region64: #{tpu_custom_call.1} parent=39 // pred_fallthru
          _
        // Predicated region
        $region65: #{tpu_custom_call.1} parent=39 // pred_check
          %p534 = pneg %p170
        $region66: #{tpu_custom_call.1} parent=39 // pred_check_branch
          %536 = sbr.rel (%p534) target = $region68
        $region67: #{tpu_custom_call.1} parent=39 // pred_region
          %538 = dma.done [#allocation5], 128
        $region68: #{tpu_custom_call.1} parent=39 // pred_fallthru
          _
      $region40: #{tpu_custom_call.1} parent=5 // pred_fallthru
        _
      %p539 = scmp.le.s32.totalorder 2, %s18
      // Predicated region
      $region69: #{tpu_custom_call.1} parent=5 // pred_check
        %p540 = pneg %p539
      $region70: #{tpu_custom_call.1} parent=5 // pred_check_branch
        %542 = sbr.rel (%p540) target = $region72
      $region71: #{tpu_custom_call.1} parent=5 // pred_region
        %s543 = ssub.s32 %s18, 2
      $region72: #{tpu_custom_call.1} parent=5 // pred_fallthru
        _
    $region6: #{tpu_custom_call.1} parent=1 // loop_footer
      %s22 = sadd.s32 1, %s18
    $region7: #{tpu_custom_call.1} parent=1 // loop_footer_branch
      %17 = sbr.rel target = $region3
    $region8: #{tpu_custom_call.1} parent=1 // loop_exit
      _
    %544 = vsyncpa [#allocation4], 1
    %s545 = scalar_lea.sflag [#allocation4], 1
    %546 = vsyncpa %s545, 1
    %547 = vsyncpa [#allocation7], 1
    %s548 = scalar_lea.sflag [#allocation7], 1
    %549 = vsyncpa %s548, 1
    %550 = vsyncpa [#allocation5], 1
    %s551 = scalar_lea.sflag [#allocation5], 1
    %552 = vsyncpa %s551, 1

</llo_original>
